<compile_context>
chip_gen: v5e
topology: v5e:2x2
jax: 0.10.0
libtpu: 0.0.40
codegen_flags: <defaults>
</compile_context>

<pallas_src>
import jax
import jax.numpy as jnp
from jax.experimental import pallas as pl
from jax.experimental.pallas import tpu as pltpu


def time_embedding_kernel(t_ref, te_ref, w1_ref, b1_ref, w2_ref, b2_ref, out_ref):
    tb = out_ref.shape[0]
    max_step = te_ref.shape[0]

    # embeddings = te[t]  -- gather as a one-hot matmul on the MXU.
    t_vals = t_ref[...]                                                  # (TB, 1) int32
    iota = jax.lax.broadcasted_iota(jnp.int32, (tb, max_step), 1)        # (TB, max_step)
    onehot = (iota == t_vals).astype(jnp.float32)                        # exact 0/1
    emb = jnp.dot(onehot, te_ref[...], preferred_element_type=jnp.float32)  # (TB, dim)

    # embeddings = act(linear1(embeddings)); embeddings = linear2(embeddings)
    h = jnp.dot(emb, w1_ref[...], preferred_element_type=jnp.float32) + b1_ref[...]
    h = h * jax.nn.sigmoid(h)                                            # SiLU
    out_ref[...] = (jnp.dot(h, w2_ref[...], preferred_element_type=jnp.float32)
                    + b2_ref[...])


def make_sinusoidal_table(max_step, dim):
    """Precomputed buffer `te` from the module __init__ (plain-JAX, host-side)."""
    assert dim % 2 == 0
    steps = jnp.arange(max_step, dtype=jnp.float32)[:, None]             # (max_step, 1)
    i = jnp.arange(0, dim, 2, dtype=jnp.float32)[None, :]                # (1, dim/2)
    ang = steps / (10000.0 ** (i / dim))
    te = jnp.zeros((max_step, dim), jnp.float32)
    te = te.at[:, 0::2].set(jnp.sin(ang))
    te = te.at[:, 1::2].set(jnp.cos(ang))
    return te


def init_params(key, dim):
    """nn.Linear-style init; weights stored (in, out) so the kernel right-multiplies."""
    hidden = 4 * dim
    k1, k2, k3, k4 = jax.random.split(key, 4)
    lim1 = 1.0 / (dim ** 0.5)
    lim2 = 1.0 / (hidden ** 0.5)
    w1 = jax.random.uniform(k1, (dim, hidden), jnp.float32, -lim1, lim1)
    b1 = jax.random.uniform(k2, (1, hidden), jnp.float32, -lim1, lim1)
    w2 = jax.random.uniform(k3, (hidden, hidden), jnp.float32, -lim2, lim2)
    b2 = jax.random.uniform(k4, (1, hidden), jnp.float32, -lim2, lim2)
    return w1, b1, w2, b2


def time_embedding_forward(t, te, w1, b1, w2, b2, *, batch_tile=8):
    """t: (B,) int32 timesteps  ->  (B, 4*dim) f32 embeddings."""
    B = t.shape[0]
    max_step, dim = te.shape
    hidden = w1.shape[1]

    tb = batch_tile
    b_pad = pl.cdiv(B, tb) * tb
    # Pad timesteps to a multiple of the batch tile (index 0 is a valid row).
    t_2d = jnp.zeros((b_pad, 1), jnp.int32).at[:B, 0].set(t.astype(jnp.int32))

    bcast = lambda i: (0, 0)
    out = pl.pallas_call(
        time_embedding_kernel,
        out_shape=jax.ShapeDtypeStruct((b_pad, hidden), jnp.float32),
        grid=(b_pad // tb,),
        in_specs=[
            pl.BlockSpec((tb, 1), lambda i: (i, 0)),        # timestep indices
            pl.BlockSpec((max_step, dim), bcast),           # sinusoidal table te
            pl.BlockSpec((dim, hidden), bcast),             # linear1 weight
            pl.BlockSpec((1, hidden), bcast),               # linear1 bias
            pl.BlockSpec((hidden, hidden), bcast),          # linear2 weight
            pl.BlockSpec((1, hidden), bcast),               # linear2 bias
        ],
        out_specs=pl.BlockSpec((tb, hidden), lambda i: (i, 0)),
        compiler_params=pltpu.CompilerParams(
            dimension_semantics=("parallel",)),
    )(t_2d, te, w1, b1, w2, b2)
    return out[:B]


def reference_forward(t, te, w1, b1, w2, b2):
    emb = te[t]
    h = jnp.dot(emb, w1, precision=jax.lax.Precision.HIGHEST) + b1
    h = h * jax.nn.sigmoid(h)
    return jnp.dot(h, w2, precision=jax.lax.Precision.HIGHEST) + b2


if __name__ == "__main__":
    dim, max_step, batch = 32, 128, 8          # hidden = 4*dim = 128 (lane dense)
    key = jax.random.PRNGKey(0)
    kt, kp = jax.random.split(key)

    t = jax.random.randint(kt, (batch,), 0, max_step, dtype=jnp.int32)
    te = make_sinusoidal_table(max_step, dim)
    w1, b1, w2, b2 = init_params(kp, dim)

    out = time_embedding_forward(t, te, w1, b1, w2, b2)
    out = jax.block_until_ready(out)

    ref = reference_forward(t, te, w1, b1, w2, b2)
    assert out.shape == (batch, 4 * dim)
    assert jnp.isfinite(out).all()
    assert jnp.allclose(out, ref, atol=1e-2, rtol=1e-2)
    print("KERNEL_OK")
</pallas_src>

<mosaic_0001>
module attributes {stable_mosaic.version = 11 : i64} {
  func.func @time_embedding_kernel(%arg0: i32, %arg1: memref<8x1xi32, #tpu.memory_space<vmem>>, %arg2: memref<128x32xf32, #tpu.memory_space<vmem>>, %arg3: memref<32x128xf32, #tpu.memory_space<vmem>>, %arg4: memref<1x128xf32, #tpu.memory_space<vmem>>, %arg5: memref<128x128xf32, #tpu.memory_space<vmem>>, %arg6: memref<1x128xf32, #tpu.memory_space<vmem>>, %arg7: memref<8x128xf32, #tpu.memory_space<vmem>>) attributes {dimension_semantics = [#tpu.dimension_semantics<parallel>], iteration_bounds = array<i64: 1>, scalar_prefetch = 0 : i64, scratch_operands = 0 : i64, tpu.core_type = #tpu.core_type<tc>, window_params = [{transform_indices = @transform_0, window_bounds = array<i64: 8, 1>}, {pipeline_mode = #tpu.pipeline_mode<synchronous>, transform_indices = @transform_1, window_bounds = array<i64: 128, 32>}, {pipeline_mode = #tpu.pipeline_mode<synchronous>, transform_indices = @transform_2, window_bounds = array<i64: 32, 128>}, {pipeline_mode = #tpu.pipeline_mode<synchronous>, transform_indices = @transform_3, window_bounds = array<i64: 1, 128>}, {pipeline_mode = #tpu.pipeline_mode<synchronous>, transform_indices = @transform_4, window_bounds = array<i64: 128, 128>}, {pipeline_mode = #tpu.pipeline_mode<synchronous>, transform_indices = @transform_5, window_bounds = array<i64: 1, 128>}, {transform_indices = @transform_6, window_bounds = array<i64: 8, 128>}]} {
    %c0 = arith.constant 0 : index
    %c0_0 = arith.constant 0 : index
    %0 = vector.load %arg1[%c0, %c0_0] : memref<8x1xi32, #tpu.memory_space<vmem>>, vector<8x1xi32>
    %1 = tpu.iota {dimensions = array<i32: 1>} : vector<8x128xi32>
    %2 = vector.broadcast %0 : vector<8x1xi32> to vector<8x128xi32>
    %3 = arith.cmpi eq, %1, %2 : vector<8x128xi32>
    %4 = arith.extui %3 : vector<8x128xi1> to vector<8x128xi32>
    %5 = arith.sitofp %4 : vector<8x128xi32> to vector<8x128xf32>
    %c0_1 = arith.constant 0 : index
    %c0_2 = arith.constant 0 : index
    %6 = vector.load %arg2[%c0_1, %c0_2] : memref<128x32xf32, #tpu.memory_space<vmem>>, vector<128x32xf32>
    %cst = arith.constant dense<0.000000e+00> : vector<8x32xf32>
    %7 = tpu.matmul %5, %6, %cst {dimension_numbers = #tpu.dot_dimension_numbers<[1], [0], [0], [1], [0, 0, 1, 1], [], []>} : vector<8x128xf32>, vector<128x32xf32>, vector<8x32xf32> -> vector<8x32xf32>
    %c0_3 = arith.constant 0 : index
    %c0_4 = arith.constant 0 : index
    %8 = vector.load %arg3[%c0_3, %c0_4] : memref<32x128xf32, #tpu.memory_space<vmem>>, vector<32x128xf32>
    %cst_5 = arith.constant dense<0.000000e+00> : vector<8x128xf32>
    %9 = tpu.matmul %7, %8, %cst_5 {dimension_numbers = #tpu.dot_dimension_numbers<[1], [0], [0], [1], [0, 0, 1, 1], [], []>} : vector<8x32xf32>, vector<32x128xf32>, vector<8x128xf32> -> vector<8x128xf32>
    %c0_6 = arith.constant 0 : index
    %c0_7 = arith.constant 0 : index
    %10 = vector.load %arg4[%c0_6, %c0_7] : memref<1x128xf32, #tpu.memory_space<vmem>>, vector<1x128xf32>
    %11 = vector.broadcast %10 : vector<1x128xf32> to vector<8x128xf32>
    %12 = arith.addf %9, %11 : vector<8x128xf32>
    %13 = arith.negf %12 : vector<8x128xf32>
    %14 = math.exp %13 : vector<8x128xf32>
    %cst_8 = arith.constant 1.000000e+00 : f32
    %15 = vector.broadcast %cst_8 : f32 to vector<8x128xf32>
    %16 = arith.addf %15, %14 : vector<8x128xf32>
    %17 = arith.divf %15, %16 : vector<8x128xf32>
    %18 = arith.mulf %12, %17 : vector<8x128xf32>
    %c0_9 = arith.constant 0 : index
    %c0_10 = arith.constant 0 : index
    %19 = vector.load %arg5[%c0_9, %c0_10] : memref<128x128xf32, #tpu.memory_space<vmem>>, vector<128x128xf32>
    %cst_11 = arith.constant dense<0.000000e+00> : vector<8x128xf32>
    %20 = tpu.matmul %18, %19, %cst_11 {dimension_numbers = #tpu.dot_dimension_numbers<[1], [0], [0], [1], [0, 0, 1, 1], [], []>} : vector<8x128xf32>, vector<128x128xf32>, vector<8x128xf32> -> vector<8x128xf32>
    %c0_12 = arith.constant 0 : index
    %c0_13 = arith.constant 0 : index
    %21 = vector.load %arg6[%c0_12, %c0_13] : memref<1x128xf32, #tpu.memory_space<vmem>>, vector<1x128xf32>
    %22 = vector.broadcast %21 : vector<1x128xf32> to vector<8x128xf32>
    %23 = arith.addf %20, %22 : vector<8x128xf32>
    %c0_14 = arith.constant 0 : index
    %c0_15 = arith.constant 0 : index
    %24 = vector.load %arg7[%c0_14, %c0_15] : memref<8x128xf32, #tpu.memory_space<vmem>>, vector<8x128xf32>
    tpu.vector_store %arg7[%c0_14, %c0_15], %23 {strides = array<i32>} : memref<8x128xf32, #tpu.memory_space<vmem>>, vector<8x128xf32>,
    return
  }
  func.func @transform_0(%arg0: i32) -> (i32, i32) {
    %c0_i32 = arith.constant 0 : i32
    %c0_i32_0 = arith.constant 0 : i32
    return %arg0, %c0_i32 : i32, i32
  }
  func.func @transform_1(%arg0: i32) -> (i32, i32) {
    %c0_i32 = arith.constant 0 : i32
    %c0_i32_0 = arith.constant 0 : i32
    %c0_i32_1 = arith.constant 0 : i32
    return %c0_i32, %c0_i32_0 : i32, i32
  }
  func.func @transform_2(%arg0: i32) -> (i32, i32) {
    %c0_i32 = arith.constant 0 : i32
    %c0_i32_0 = arith.constant 0 : i32
    %c0_i32_1 = arith.constant 0 : i32
    return %c0_i32, %c0_i32_0 : i32, i32
  }
  func.func @transform_3(%arg0: i32) -> (i32, i32) {
    %c0_i32 = arith.constant 0 : i32
    %c0_i32_0 = arith.constant 0 : i32
    %c0_i32_1 = arith.constant 0 : i32
    return %c0_i32, %c0_i32_0 : i32, i32
  }
  func.func @transform_4(%arg0: i32) -> (i32, i32) {
    %c0_i32 = arith.constant 0 : i32
    %c0_i32_0 = arith.constant 0 : i32
    %c0_i32_1 = arith.constant 0 : i32
    return %c0_i32, %c0_i32_0 : i32, i32
  }
  func.func @transform_5(%arg0: i32) -> (i32, i32) {
    %c0_i32 = arith.constant 0 : i32
    %c0_i32_0 = arith.constant 0 : i32
    %c0_i32_1 = arith.constant 0 : i32
    return %c0_i32, %c0_i32_0 : i32, i32
  }
  func.func @transform_6(%arg0: i32) -> (i32, i32) {
    %c0_i32 = arith.constant 0 : i32
    %c0_i32_0 = arith.constant 0 : i32
    return %arg0, %c0_i32 : i32, i32
  }
}

</mosaic_0001>

<llo_original>
// kernel: tpu_custom_call.1
$region0: #{tpu_custom_call.1}
  #allocation0 [shape = 'u32[]', space=smem, size = 0x4, offset = 0x4, fixed_abs, tag = 'smem constant byte address 0x4 - core index']
  #allocation1 [shape = 'u32[72,128]{1,0:T(1,128)}', space=vmem, size = 0x9000, scoped, tag = 'internal scratch']
  %s0 = inlined_call_operand.vmem [shape: s32[8,1], index: 0, kind: input, shape index: {}]
  %s1 = inlined_call_operand.vmem [shape: f32[128,32], index: 1, kind: input, shape index: {}]
  %s2 = inlined_call_operand.vmem [shape: f32[32,128], index: 2, kind: input, shape index: {}]
  %s3 = inlined_call_operand.vmem [shape: f32[1,128], index: 3, kind: input, shape index: {}]
  %s4 = inlined_call_operand.vmem [shape: f32[128,128], index: 4, kind: input, shape index: {}]
  %s5 = inlined_call_operand.vmem [shape: f32[1,128], index: 5, kind: input, shape index: {}]
  %s6 = inlined_call_operand.hbm [shape: f32[8,128], index: 6, kind: output, shape index: {}]
  %s7 = sld [smem:[#allocation0]]
  $region34: #{tpu_custom_call.1} parent=0
    _
  %s9 = ssub.s32 1, %s7
  %s10 = scalar_select 0, %s9, %s7
  $region1: #{tpu_custom_call.1} parent=0
    #allocation2 [shape = 'u8[4096]{0}', space=vmem, size = 0x1000, scoped, tag = 'output window, operand 0, single buffered']
    #allocation3 [shape = 's32[1]{0}', space=sflag, size = 0x4, scoped, tag = 'scoped memory for tpu_custom_call.1']
    %11 = vsyncpa [#allocation3], 0
    // Predicated region
    $region2: #{tpu_custom_call.1} parent=1 // pred_check
      _
    $region3: #{tpu_custom_call.1} parent=1 // pred_check_branch
      %13 = sbr.rel (0) target = $region5
    $region4: #{tpu_custom_call.1} parent=1 // pred_region
      _
    $region5: #{tpu_custom_call.1} parent=1 // pred_fallthru
      _
    // Predicated region
    $region6: #{tpu_custom_call.1} parent=1 // pred_check
      _
    $region7: #{tpu_custom_call.1} parent=1 // pred_check_branch
      %15 = sbr.rel (0) target = $region9
    $region8: #{tpu_custom_call.1} parent=1 // pred_region
      _
    $region9: #{tpu_custom_call.1} parent=1 // pred_fallthru
      _
    // Predicated region
    $region10: #{tpu_custom_call.1} parent=1 // pred_check
      _
    $region11: #{tpu_custom_call.1} parent=1 // pred_check_branch
      %17 = sbr.rel (0) target = $region13
    $region12: #{tpu_custom_call.1} parent=1 // pred_region
      _
    $region13: #{tpu_custom_call.1} parent=1 // pred_fallthru
      _
    // Predicated region
    $region14: #{tpu_custom_call.1} parent=1 // pred_check
      _
    $region15: #{tpu_custom_call.1} parent=1 // pred_check_branch
      %19 = sbr.rel (0) target = $region17
    $region16: #{tpu_custom_call.1} parent=1 // pred_region
      _
    $region17: #{tpu_custom_call.1} parent=1 // pred_fallthru
      _
    // Predicated region
    $region18: #{tpu_custom_call.1} parent=1 // pred_check
      _
    $region19: #{tpu_custom_call.1} parent=1 // pred_check_branch
      %21 = sbr.rel (0) target = $region21
    $region20: #{tpu_custom_call.1} parent=1 // pred_region
      _
    $region21: #{tpu_custom_call.1} parent=1 // pred_fallthru
      _
    // Predicated region
    $region22: #{tpu_custom_call.1} parent=1 // pred_check
      _
    $region23: #{tpu_custom_call.1} parent=1 // pred_check_branch
      %23 = sbr.rel (0) target = $region25
    $region24: #{tpu_custom_call.1} parent=1 // pred_region
      _
    $region25: #{tpu_custom_call.1} parent=1 // pred_fallthru
      _
    %v24 = vld [vmem:[%s0] sm:$0xff]
    %v25 = vlaneseq
    %v26 = vand.u32 %v25, 127
    %27 = vset.pattern.permute.xlu0 0
    %28 = vperm.xlu0 %27, %v24
    %v29 = vpop.permute.xlu0 %28
    %vm30 = vcmp.eq.s32.totalorder %v26, %v29
    %v31 = vsel %vm30, 1, 0
    %v32 = vcvt.s32.f32 %v31
    %v33 = vld [vmem:[%s1] sm:$0xff]
    %v34 = vld [vmem:[%s1 + $0x8] sm:$0xff]
    %v35 = vld [vmem:[%s1 + $0x10] sm:$0xff]
    %v36 = vld [vmem:[%s1 + $0x18] sm:$0xff]
    %v37 = vld [vmem:[%s1 + $0x20] sm:$0xff]
    %v38 = vld [vmem:[%s1 + $0x28] sm:$0xff]
    %v39 = vld [vmem:[%s1 + $0x30] sm:$0xff]
    %v40 = vld [vmem:[%s1 + $0x38] sm:$0xff]
    %v41 = vld [vmem:[%s1 + $0x40] sm:$0xff]
    %v42 = vld [vmem:[%s1 + $0x48] sm:$0xff]
    %v43 = vld [vmem:[%s1 + $0x50] sm:$0xff]
    %v44 = vld [vmem:[%s1 + $0x58] sm:$0xff]
    %v45 = vld [vmem:[%s1 + $0x60] sm:$0xff]
    %v46 = vld [vmem:[%s1 + $0x68] sm:$0xff]
    %v47 = vld [vmem:[%s1 + $0x70] sm:$0xff]
    %v48 = vld [vmem:[%s1 + $0x78] sm:$0xff]
    %49 = vmatpush.msra.mxu0 %v48
    %50 = vmatpush.msra.mxu0 %v47
    %51 = vmatpush.msra.mxu0 %v46
    %52 = vmatpush.msra.mxu0 %v45
    %53 = vmatpush.msra.mxu0 %v44
    %54 = vmatpush.msra.mxu0 %v43
    %55 = vmatpush.msra.mxu0 %v42
    %56 = vmatpush.msra.mxu0 %v41
    %57 = vmatpush.msra.mxu0 %v40
    %58 = vmatpush.msra.mxu0 %v39
    %59 = vmatpush.msra.mxu0 %v38
    %60 = vmatpush.msra.mxu0 %v37
    %61 = vmatpush.msra.mxu0 %v36
    %62 = vmatpush.msra.mxu0 %v35
    %63 = vmatpush.msra.mxu0 %v34
    %64 = vmatpush.msra.mxu0 %v33
    %65 = vmatmul.f32.gmra.mxu0 %v32
    %v66 = vpop.f32.mrf.mxu0
    %v67 = vadd.f32 0.0, %v66
    %68 = vdwg.mxu0
    %v69 = vld [vmem:[%s2] sm:$0xff]
    %v70 = vld [vmem:[%s2 + $0x8] sm:$0xff]
    %v71 = vld [vmem:[%s2 + $0x10] sm:$0xff]
    %v72 = vld [vmem:[%s2 + $0x18] sm:$0xff]
    %v73 = vld [vmem:[%s3] sm:$0x1]
    %v75 = vperm.slane %v73, 0
    %vm77 = vcmask 261120
    %v79 = vsel %vm77, %v67, 0
    %81 = vmatpush.msra.mxu0 0.0
    %82 = vmatpush.msra.mxu0 0.0
    %83 = vmatpush.msra.mxu0 0.0
    %84 = vmatpush.msra.mxu0 0.0
    %85 = vmatpush.msra.mxu0 0.0
    %86 = vmatpush.msra.mxu0 0.0
    %87 = vmatpush.msra.mxu0 0.0
    %88 = vmatpush.msra.mxu0 0.0
    %89 = vmatpush.msra.mxu0 0.0
    %90 = vmatpush.msra.mxu0 0.0
    %91 = vmatpush.msra.mxu0 0.0
    %92 = vmatpush.msra.mxu0 0.0
    %93 = vmatpush.msra.mxu0 %v72
    %94 = vmatpush.msra.mxu0 %v71
    %95 = vmatpush.msra.mxu0 %v70
    %96 = vmatpush.msra.mxu0 %v69
    %97 = vmatmul.f32.gmra.mxu0 %v79
    %v98 = vpop.f32.mrf.mxu0
    %v99 = vadd.f32 %v75, %v98
    %100 = vdwg.mxu0
    %v101 = vxor.u32 %v99, 2147483648
    %v102 = vmul.f32 %v101, 1.442695
    %v103 = vpow.pop %v102
    %v104 = vadd.f32 %v103, 1.0
    %v105 = vrcp.pop %v104
    %v106 = vmul.f32 %v104, %v105
    %v107 = vsub.f32 1.0, %v106
    %v108 = vmul.f32 %v105, %v107
    %v109 = vadd.f32 %v105, %v108
    %vm110 = vweird.f32 %v104
    %vm111 = vweird.f32 %v105
    %vm112 = vmor %vm110, %vm111
    %v113 = vsel %vm112, %v105, %v109
    %v114 = vand.u32 2147483647, %v104
    %vm115 = vcmp.eq.f32.partialorder %v114, 8.507059e+37
    %v116 = vand.u32 %v104, 2147483648
    %v117 = vor.u32 1.1754944e-38, %v116
    %v118 = vsel %vm115, %v117, %v113
    %v119 = vmul.f32 1.0, %v118
    %v120 = vmul.f32 %v99, %v119
    %v121 = vld [vmem:[%s4] sm:$0xff]
    %v122 = vld [vmem:[%s4 + $0x8] sm:$0xff]
    %v123 = vld [vmem:[%s4 + $0x10] sm:$0xff]
    %v124 = vld [vmem:[%s4 + $0x18] sm:$0xff]
    %v125 = vld [vmem:[%s4 + $0x20] sm:$0xff]
    %v126 = vld [vmem:[%s4 + $0x28] sm:$0xff]
    %v127 = vld [vmem:[%s4 + $0x30] sm:$0xff]
    %v128 = vld [vmem:[%s4 + $0x38] sm:$0xff]
    %v129 = vld [vmem:[%s4 + $0x40] sm:$0xff]
    %v130 = vld [vmem:[%s4 + $0x48] sm:$0xff]
    %v131 = vld [vmem:[%s4 + $0x50] sm:$0xff]
    %v132 = vld [vmem:[%s4 + $0x58] sm:$0xff]
    %v133 = vld [vmem:[%s4 + $0x60] sm:$0xff]
    %v134 = vld [vmem:[%s4 + $0x68] sm:$0xff]
    %v135 = vld [vmem:[%s4 + $0x70] sm:$0xff]
    %v136 = vld [vmem:[%s4 + $0x78] sm:$0xff]
    %v137 = vld [vmem:[%s5] sm:$0x1]
    %v139 = vperm.slane %v137, 0
    %141 = vmatpush.msra.mxu0 %v136
    %142 = vmatpush.msra.mxu0 %v135
    %143 = vmatpush.msra.mxu0 %v134
    %144 = vmatpush.msra.mxu0 %v133
    %145 = vmatpush.msra.mxu0 %v132
    %146 = vmatpush.msra.mxu0 %v131
    %147 = vmatpush.msra.mxu0 %v130
    %148 = vmatpush.msra.mxu0 %v129
    %149 = vmatpush.msra.mxu0 %v128
    %150 = vmatpush.msra.mxu0 %v127
    %151 = vmatpush.msra.mxu0 %v126
    %152 = vmatpush.msra.mxu0 %v125
    %153 = vmatpush.msra.mxu0 %v124
    %154 = vmatpush.msra.mxu0 %v123
    %155 = vmatpush.msra.mxu0 %v122
    %156 = vmatpush.msra.mxu0 %v121
    %157 = vmatmul.f32.gmra.mxu0 %v120
    %v158 = vpop.f32.mrf.mxu0
    %v159 = vadd.f32 %v139, %v158
    %160 = vdwg.mxu0
    %161 = vst [vmem:[#allocation2] sm:$0xff] %v159
    // Predicated region
    $region26: #{tpu_custom_call.1} parent=1 // pred_check
      _
    $region27: #{tpu_custom_call.1} parent=1 // pred_check_branch
      %163 = sbr.rel (0) target = $region29
    $region28: #{tpu_custom_call.1} parent=1 // pred_region
      %165 = vsyncadd [#allocation3], 0
      %s167 = sshll.u32 [#allocation2], 4
      %s168 = int_to_ptr.vmem [resolvable:$true] %s167
      %s169 = sshll.u32 %s6, 4
      %s170 = int_to_ptr.hbm [resolvable:$true] %s169
      %172 = dma.vmem_to_hbm [thread:$0]  %s168, 128, %s170, [#allocation3]
    $region29: #{tpu_custom_call.1} parent=1 // pred_fallthru
      _
    // Predicated region
    $region30: #{tpu_custom_call.1} parent=1 // pred_check
      _
    $region31: #{tpu_custom_call.1} parent=1 // pred_check_branch
      %174 = sbr.rel (0) target = $region33
    $region32: #{tpu_custom_call.1} parent=1 // pred_region
      %176 = dma.done [#allocation3], 128
    $region33: #{tpu_custom_call.1} parent=1 // pred_fallthru
      _
    %177 = vsyncpa [#allocation3], 1

</llo_original>
